<compile_context>
chip_gen: v6e
topology: v6e:2x2x1
jax: 0.10.0
libtpu: 0.0.40
codegen_flags: <defaults>
</compile_context>

<pallas_src>
import functools

import jax
import jax.numpy as jnp
from jax.experimental import pallas as pl
from jax.experimental.pallas import tpu as pltpu


def _round_up(n, m):
    return ((n + m - 1) // m) * m


def _linear_bias_kernel(x_ref, wt_ref, b_ref, o_ref, *, activation):
    # x_ref: (B, K), wt_ref: (K, N), b_ref: (1, N), o_ref: (B, N)
    acc = jnp.dot(x_ref[...], wt_ref[...], preferred_element_type=jnp.float32)
    acc = acc + b_ref[...]          # (1, N) broadcasts over batch rows
    if activation:
        acc = jnp.maximum(acc, 0.0)
    o_ref[...] = acc.astype(o_ref.dtype)


def _linear_nobias_kernel(x_ref, wt_ref, o_ref, *, activation):
    acc = jnp.dot(x_ref[...], wt_ref[...], preferred_element_type=jnp.float32)
    if activation:
        acc = jnp.maximum(acc, 0.0)
    o_ref[...] = acc.astype(o_ref.dtype)


def meta_linear_forward(x, weights, bias=None, *, use_bias=True, activation=True):
    """Pallas implementation of MetaLinearLayer.forward.

    x: (b, f_in); weights: (f_out, f_in) (PyTorch layout); bias: (f_out,).
    Returns float32 (b, f_out).
    """
    b, f_in = x.shape
    f_out, f_in_w = weights.shape
    assert f_in == f_in_w, "weight / input feature mismatch"

    if x.dtype != jnp.float32:
        x = x.astype(jnp.float32)
    if weights.dtype != jnp.float32:
        weights = weights.astype(jnp.float32)

    # Wrapper-side layout plumbing (one-time, outside the kernel):
    #   transpose W -> (f_in, f_out); pad lanes to 128, sublanes (batch) to 8.
    b_p = _round_up(b, 8)
    k_p = _round_up(f_in, 128)
    n_p = _round_up(f_out, 128)

    x_p = x
    if (b_p, k_p) != (b, f_in):
        x_p = jnp.pad(x, ((0, b_p - b), (0, k_p - f_in)))

    w_t = weights.T                              # (f_in, f_out)
    w_p = w_t
    if (k_p, n_p) != (f_in, f_out):
        w_p = jnp.pad(w_t, ((0, k_p - f_in), (0, n_p - f_out)))

    vmem = pl.BlockSpec(memory_space=pltpu.MemorySpace.VMEM)
    out_shape = jax.ShapeDtypeStruct((b_p, n_p), jnp.float32)

    if use_bias:
        assert bias is not None, "use_bias=True requires a bias vector"
        if bias.dtype != jnp.float32:
            bias = bias.astype(jnp.float32)
        bias_p = bias if n_p == f_out else jnp.pad(bias, (0, n_p - f_out))
        bias_p = bias_p.reshape(1, n_p)
        kernel = functools.partial(_linear_bias_kernel, activation=activation)
        out_p = pl.pallas_call(
            kernel,
            out_shape=out_shape,
            in_specs=[vmem, vmem, vmem],
            out_specs=vmem,
        )(x_p, w_p, bias_p)
    else:
        kernel = functools.partial(_linear_nobias_kernel, activation=activation)
        out_p = pl.pallas_call(
            kernel,
            out_shape=out_shape,
            in_specs=[vmem, vmem],
            out_specs=vmem,
        )(x_p, w_p)

    # Drop the padding (batch rows + f_out columns).
    return out_p[:b, :f_out]


def xavier_uniform(key, shape):
    """Matches torch.nn.init.xavier_uniform_ for a (fan_out, fan_in) weight."""
    fan_out, fan_in = shape
    bound = (6.0 / (fan_in + fan_out)) ** 0.5
    return jax.random.uniform(key, shape, minval=-bound, maxval=bound,
                              dtype=jnp.float32)


if __name__ == "__main__":
    key = jax.random.PRNGKey(0)
    k_x, k_w = jax.random.split(key)

    batch = 8
    num_in_filters = 32
    num_out_filters = 64

    # Parameters (mirrors MetaLinearLayer.__init__).
    weights = xavier_uniform(k_w, (num_out_filters, num_in_filters))
    bias = jnp.zeros((num_out_filters,), dtype=jnp.float32)

    # Input batch (b, f).
    x = jax.random.normal(k_x, (batch, num_in_filters), dtype=jnp.float32)

    # Variant 1: use_bias=True, activation=True (default MAML++ config).
    out = meta_linear_forward(x, weights, bias, use_bias=True, activation=True)
    out = jax.block_until_ready(out)
    ref = jnp.maximum(x @ weights.T + bias, 0.0)
    assert out.shape == (batch, num_out_filters)
    assert out.dtype == jnp.float32
    assert jnp.allclose(out, ref, atol=1e-5, rtol=1e-5)

    # Variant 2: use_bias=False, activation=False (no dummy bias DMA).
    out2 = meta_linear_forward(x, weights, None, use_bias=False, activation=False)
    out2 = jax.block_until_ready(out2)
    ref2 = x @ weights.T
    assert jnp.allclose(out2, ref2, atol=1e-5, rtol=1e-5)

    print("KERNEL_OK")
</pallas_src>

<mosaic_0001>
module attributes {stable_mosaic.version = 11 : i64} {
  func.func @_linear_bias_kernel(%arg0: memref<8x128xf32, #tpu.memory_space<vmem>>, %arg1: memref<128x128xf32, #tpu.memory_space<vmem>>, %arg2: memref<1x128xf32, #tpu.memory_space<vmem>>, %arg3: memref<8x128xf32, #tpu.memory_space<vmem>>) attributes {dimension_semantics = [], scalar_prefetch = 0 : i64, scratch_operands = 0 : i64, tpu.core_type = #tpu.core_type<tc>} {
    %c0 = arith.constant 0 : index
    %c0_0 = arith.constant 0 : index
    %0 = vector.load %arg0[%c0, %c0_0] : memref<8x128xf32, #tpu.memory_space<vmem>>, vector<8x128xf32>
    %c0_1 = arith.constant 0 : index
    %c0_2 = arith.constant 0 : index
    %1 = vector.load %arg1[%c0_1, %c0_2] : memref<128x128xf32, #tpu.memory_space<vmem>>, vector<128x128xf32>
    %cst = arith.constant dense<0.000000e+00> : vector<8x128xf32>
    %2 = tpu.matmul %0, %1, %cst {dimension_numbers = #tpu.dot_dimension_numbers<[1], [0], [0], [1], [0, 0, 1, 1], [], []>} : vector<8x128xf32>, vector<128x128xf32>, vector<8x128xf32> -> vector<8x128xf32>
    %c0_3 = arith.constant 0 : index
    %c0_4 = arith.constant 0 : index
    %3 = vector.load %arg2[%c0_3, %c0_4] : memref<1x128xf32, #tpu.memory_space<vmem>>, vector<1x128xf32>
    %4 = vector.broadcast %3 : vector<1x128xf32> to vector<8x128xf32>
    %5 = arith.addf %2, %4 : vector<8x128xf32>
    %cst_5 = arith.constant 0.000000e+00 : f32
    %6 = vector.broadcast %cst_5 : f32 to vector<8x128xf32>
    %7 = arith.maximumf %5, %6 : vector<8x128xf32>
    %c0_6 = arith.constant 0 : index
    %c0_7 = arith.constant 0 : index
    %8 = vector.load %arg3[%c0_6, %c0_7] : memref<8x128xf32, #tpu.memory_space<vmem>>, vector<8x128xf32>
    tpu.vector_store %arg3[%c0_6, %c0_7], %7 {strides = array<i32>} : memref<8x128xf32, #tpu.memory_space<vmem>>, vector<8x128xf32>,
    return
  }
}

</mosaic_0001>

<llo_original>
// kernel: tpu_custom_call.1
$region0: #{tpu_custom_call.1}
  #allocation0 [shape = 'u32[]', space=smem, size = 0x4, offset = 0x4, fixed_abs, tag = 'smem constant byte address 0x4 - core index']
  #allocation1 [shape = 'u32[144,128]{1,0:T(1,128)}', space=vmem, size = 0x12000, scoped, tag = 'internal scratch']
  %s0 = inlined_call_operand.hbm [shape: f32[8,128], index: 0, kind: input, shape index: {}]
  %s1 = inlined_call_operand.hbm [shape: f32[128,128], index: 1, kind: input, shape index: {}]
  %s2 = inlined_call_operand.vmem [shape: f32[1,128], index: 2, kind: input, shape index: {}]
  %s3 = inlined_call_operand.hbm [shape: f32[8,128], index: 3, kind: output, shape index: {}]
  %s4 = sld [smem:[#allocation0]]
  $region30: #{tpu_custom_call.1} parent=0
    _
  %s6 = ssub.s32 1, %s4
  %s7 = scalar_select 0, %s6, %s4
  $region1: #{tpu_custom_call.1} parent=0
    #allocation2 [shape = 'u8[4096]{0}', space=vmem, size = 0x1000, scoped, tag = 'input window, operand 0, single buffered']
    #allocation3 [shape = 's32[1]{0}', space=sflag, size = 0x4, scoped, tag = 'scoped memory for tpu_custom_call.1']
    #allocation4 [shape = 's32[1]{0}', space=sflag, size = 0x4, scoped, tag = 'scoped memory for tpu_custom_call.1']
    #allocation5 [shape = 'u8[65536]{0}', space=vmem, size = 0x10000, scoped, tag = 'input window, operand 1, single buffered']
    #allocation6 [shape = 's32[1]{0}', space=sflag, size = 0x4, scoped, tag = 'scoped memory for tpu_custom_call.1']
    #allocation7 [shape = 'u8[4096]{0}', space=vmem, size = 0x1000, scoped, tag = 'output window, operand 0, single buffered']
    %8 = vsyncpa [#allocation3], 0
    %9 = vsyncpa [#allocation6], 0
    %10 = vsyncpa [#allocation4], 0
    // Predicated region
    $region2: #{tpu_custom_call.1} parent=1 // pred_check
      _
    $region3: #{tpu_custom_call.1} parent=1 // pred_check_branch
      %12 = sbr.rel (0) target = $region5
    $region4: #{tpu_custom_call.1} parent=1 // pred_region
      %s14 = ssub.s32 128, 128
      %15 = vsyncadd [#allocation3], %s14
      %s17 = sshll.u32 [#allocation2], 4
      %s18 = int_to_ptr.vmem [resolvable:$true] %s17
      %20 = dma.hbm_to_vmem [thread:$0]  %s0, 128, %s18, [#allocation3]
    $region5: #{tpu_custom_call.1} parent=1 // pred_fallthru
      _
    // Predicated region
    $region6: #{tpu_custom_call.1} parent=1 // pred_check
      _
    $region7: #{tpu_custom_call.1} parent=1 // pred_check_branch
      %22 = sbr.rel (0) target = $region9
    $region8: #{tpu_custom_call.1} parent=1 // pred_region
      %s24 = ssub.s32 2048, 2048
      %25 = vsyncadd [#allocation6], %s24
      %s26 = sshll.u32 [#allocation5], 4
      %s27 = int_to_ptr.vmem [resolvable:$true] %s26
      %32 = dma.hbm_to_vmem [thread:$0]  %s1, 2048, %s27, [#allocation6], 128, 128, 8
    $region9: #{tpu_custom_call.1} parent=1 // pred_fallthru
      _
    // Predicated region
    $region10: #{tpu_custom_call.1} parent=1 // pred_check
      _
    $region11: #{tpu_custom_call.1} parent=1 // pred_check_branch
      %34 = sbr.rel (0) target = $region13
    $region12: #{tpu_custom_call.1} parent=1 // pred_region
      _
    $region13: #{tpu_custom_call.1} parent=1 // pred_fallthru
      _
    // Predicated region
    $region14: #{tpu_custom_call.1} parent=1 // pred_check
      _
    $region15: #{tpu_custom_call.1} parent=1 // pred_check_branch
      %36 = sbr.rel (0) target = $region17
    $region16: #{tpu_custom_call.1} parent=1 // pred_region
      %37 = dma.done [#allocation3], 128
    $region17: #{tpu_custom_call.1} parent=1 // pred_fallthru
      _
    // Predicated region
    $region18: #{tpu_custom_call.1} parent=1 // pred_check
      _
    $region19: #{tpu_custom_call.1} parent=1 // pred_check_branch
      %39 = sbr.rel (0) target = $region21
    $region20: #{tpu_custom_call.1} parent=1 // pred_region
      %40 = dma.done [#allocation6], 2048
    $region21: #{tpu_custom_call.1} parent=1 // pred_fallthru
      _
    %v41 = vld [vmem:[#allocation2] sm:$0xff]
    %v42 = vld [vmem:[#allocation5] sm:$0xff]
    %v43 = vld [vmem:[#allocation5 + $0x8] sm:$0xff]
    %v44 = vld [vmem:[#allocation5 + $0x10] sm:$0xff]
    %v45 = vld [vmem:[#allocation5 + $0x18] sm:$0xff]
    %v46 = vld [vmem:[#allocation5 + $0x20] sm:$0xff]
    %v47 = vld [vmem:[#allocation5 + $0x28] sm:$0xff]
    %v48 = vld [vmem:[#allocation5 + $0x30] sm:$0xff]
    %v49 = vld [vmem:[#allocation5 + $0x38] sm:$0xff]
    %v50 = vld [vmem:[#allocation5 + $0x40] sm:$0xff]
    %v51 = vld [vmem:[#allocation5 + $0x48] sm:$0xff]
    %v52 = vld [vmem:[#allocation5 + $0x50] sm:$0xff]
    %v53 = vld [vmem:[#allocation5 + $0x58] sm:$0xff]
    %v54 = vld [vmem:[#allocation5 + $0x60] sm:$0xff]
    %v55 = vld [vmem:[#allocation5 + $0x68] sm:$0xff]
    %v56 = vld [vmem:[#allocation5 + $0x70] sm:$0xff]
    %v57 = vld [vmem:[#allocation5 + $0x78] sm:$0xff]
    %v58 = vld [vmem:[%s2] sm:$0x1]
    %v60 = vlaneseq
    %v61 = vshrl.u32 %v60, 7
    %v62 = vsub.s32 0, %v61
    %v63 = vrot.slane %v58, %v62
    %65 = vmatprep.subr.mxu0 0.0
    %66 = vmatpush1.msra.mxu0 %v57
    %67 = vmatprep.subr.mxu0 0.0
    %68 = vmatpush1.msra.mxu0 %v56
    %69 = vmatprep.subr.mxu0 0.0
    %70 = vmatpush1.msra.mxu0 %v55
    %71 = vmatprep.subr.mxu0 0.0
    %72 = vmatpush1.msra.mxu0 %v54
    %73 = vmatprep.subr.mxu0 0.0
    %74 = vmatpush1.msra.mxu0 %v53
    %75 = vmatprep.subr.mxu0 0.0
    %76 = vmatpush1.msra.mxu0 %v52
    %77 = vmatprep.subr.mxu0 0.0
    %78 = vmatpush1.msra.mxu0 %v51
    %79 = vmatprep.subr.mxu0 0.0
    %80 = vmatpush1.msra.mxu0 %v50
    %81 = vmatprep.subr.mxu0 0.0
    %82 = vmatpush1.msra.mxu0 %v49
    %83 = vmatprep.subr.mxu0 0.0
    %84 = vmatpush1.msra.mxu0 %v48
    %85 = vmatprep.subr.mxu0 0.0
    %86 = vmatpush1.msra.mxu0 %v47
    %87 = vmatprep.subr.mxu0 0.0
    %88 = vmatpush1.msra.mxu0 %v46
    %89 = vmatprep.subr.mxu0 0.0
    %90 = vmatpush1.msra.mxu0 %v45
    %91 = vmatprep.subr.mxu0 0.0
    %92 = vmatpush1.msra.mxu0 %v44
    %93 = vmatprep.subr.mxu0 0.0
    %94 = vmatpush1.msra.mxu0 %v43
    %95 = vmatprep.subr.mxu0 0.0
    %96 = vmatpush1.msra.mxu0 %v42
    %97 = vmatprep.subr.mxu0 0.0
    %98 = vmatpush2.msra.mxu0 0.0
    %99 = vmatprep.subr.mxu0 0.0
    %100 = vmatpush2.msra.mxu0 0.0
    %101 = vmatprep.subr.mxu0 0.0
    %102 = vmatpush2.msra.mxu0 0.0
    %103 = vmatprep.subr.mxu0 0.0
    %104 = vmatpush2.msra.mxu0 0.0
    %105 = vmatprep.subr.mxu0 0.0
    %106 = vmatpush2.msra.mxu0 0.0
    %107 = vmatprep.subr.mxu0 0.0
    %108 = vmatpush2.msra.mxu0 0.0
    %109 = vmatprep.subr.mxu0 0.0
    %110 = vmatpush2.msra.mxu0 0.0
    %111 = vmatprep.subr.mxu0 0.0
    %112 = vmatpush2.msra.mxu0 0.0
    %113 = vmatprep.subr.mxu0 0.0
    %114 = vmatpush2.msra.mxu0 0.0
    %115 = vmatprep.subr.mxu0 0.0
    %116 = vmatpush2.msra.mxu0 0.0
    %117 = vmatprep.subr.mxu0 0.0
    %118 = vmatpush2.msra.mxu0 0.0
    %119 = vmatprep.subr.mxu0 0.0
    %120 = vmatpush2.msra.mxu0 0.0
    %121 = vmatprep.subr.mxu0 0.0
    %122 = vmatpush2.msra.mxu0 0.0
    %123 = vmatprep.subr.mxu0 0.0
    %124 = vmatpush2.msra.mxu0 0.0
    %125 = vmatprep.subr.mxu0 0.0
    %126 = vmatpush2.msra.mxu0 0.0
    %127 = vmatprep.subr.mxu0 0.0
    %128 = vmatpush2.msra.mxu0 0.0
    %129 = vmatprep.mubr.f32.mxu0 0.0
    %130 = vmatmul.mubr.f32.gmra.mxu0 %v41
    %v131 = vpop.f32.mrf.mxu0
    %v132 = vadd.f32 %v63, %v131
    %v133 = vpop.f32.mrf.mxu0
    %134 = vdwg.mxu0
    %v135 = vmax.f32 %v132, 0.0
    %136 = vst [vmem:[#allocation7] sm:$0xff] %v135
    // Predicated region
    $region22: #{tpu_custom_call.1} parent=1 // pred_check
      _
    $region23: #{tpu_custom_call.1} parent=1 // pred_check_branch
      %138 = sbr.rel (0) target = $region25
    $region24: #{tpu_custom_call.1} parent=1 // pred_region
      %s140 = ssub.s32 128, 128
      %141 = vsyncadd [#allocation4], %s140
      %s143 = sshll.u32 [#allocation7], 4
      %s144 = int_to_ptr.vmem [resolvable:$true] %s143
      %146 = dma.vmem_to_hbm [thread:$0]  %s144, 128, %s3, [#allocation4]
    $region25: #{tpu_custom_call.1} parent=1 // pred_fallthru
      _
    // Predicated region
    $region26: #{tpu_custom_call.1} parent=1 // pred_check
      _
    $region27: #{tpu_custom_call.1} parent=1 // pred_check_branch
      %148 = sbr.rel (0) target = $region29
    $region28: #{tpu_custom_call.1} parent=1 // pred_region
      %149 = dma.done [#allocation4], 128
    $region29: #{tpu_custom_call.1} parent=1 // pred_fallthru
      _
    %150 = vsyncpa [#allocation3], 1
    %151 = vsyncpa [#allocation6], 1
    %152 = vsyncpa [#allocation4], 1

</llo_original>
